<compile_context>
chip_gen: v7x
topology: tpu7x:2x2x1
jax: 0.10.0
libtpu: 0.0.40
codegen_flags: <defaults>
</compile_context>

<pallas_src>
import functools

import jax
import jax.numpy as jnp
from jax import lax
from jax.experimental import pallas as pl
from jax.experimental.pallas import tpu as pltpu

EPS = 1e-5
_MAX_BLOCK_BYTES = 2 * 1024 * 1024       # per-grid-step DMA budget (input dtype)
_MIN_LANE_TILE = 128
_FULL_ROW_CAP_BYTES = 4 * 1024 * 1024    # cap for "whole HW row" blocks
_FAST_PATH_F32_BYTES = 4 * 1024 * 1024   # x (as f32) small enough for 1-read path
_VMEM_LIMIT = 48 * 1024 * 1024           # safe on v5e/v6e (128 MiB) and v7x (64 MiB)


# ----------------------------------------------------------------------------
# Kernels
# ----------------------------------------------------------------------------
def _fused_small_kernel(x_ref, gamma_ref, beta_ref, o_ref, *, inv_count):
    """Whole-array BatchNorm: stats + normalize in one VMEM-resident pass."""
    x = x_ref[...].astype(jnp.float32)                       # (N, C, HW)
    xs = jnp.sum(x, axis=2, keepdims=True)                   # (N, C, 1)
    xq = jnp.sum(x * x, axis=2, keepdims=True)
    mean = jnp.sum(xs, axis=0, keepdims=True) * inv_count    # (1, C, 1)
    msq = jnp.sum(xq, axis=0, keepdims=True) * inv_count
    var = jnp.maximum(msq - mean * mean, 0.0)
    scale = gamma_ref[...] * lax.rsqrt(var + EPS)             # (1, C, 1)
    bias = beta_ref[...] - mean * scale
    o_ref[...] = (x * scale + bias).astype(o_ref.dtype)


def _stats_kernel(x_ref, psum_ref, psq_ref, sum_acc, sq_acc, *,
                  total_steps, num_k, hwp, needs_mask):
    """Per-core partial per-(packed-)channel sum / sum-of-squares.

    grid = (num_splits, steps_half): axis 0 is "parallel" (one half of the
    reduction per TensorCore on v7x), axis 1 walks this core's share of the
    flattened (batch-block x hw-tile) space.  Lane-wide f32 accumulators keep
    per-step work as plain VALU adds (hidden under DMA); the single cross-lane
    reduction happens once in the finalize.
    """
    p = pl.program_id(0)
    s = pl.program_id(1)
    steps_half = pl.num_programs(1)

    @pl.when(s == 0)
    def _init():
        sum_acc[...] = jnp.zeros_like(sum_acc)
        sq_acc[...] = jnp.zeros_like(sq_acc)

    flat = p * steps_half + s

    @pl.when(flat < total_steps)          # guards the duplicated (clamped) step
    def _accumulate():
        x = x_ref[...].astype(jnp.float32)                   # (nb, Cp, T)
        if needs_mask:
            cp, t = x_ref.shape[1], x_ref.shape[2]
            k = flat % num_k
            lane = lax.broadcasted_iota(jnp.int32, (cp, t), 1)
            valid = (k * t + lane) < hwp
            x = jnp.where(valid[None, :, :], x, 0.0)
        sum_acc[...] += jnp.sum(x, axis=0)                    # VALU only
        sq_acc[...] += jnp.sum(x * x, axis=0)

    @pl.when(s == steps_half - 1)
    def _finalize():
        psum_ref[0] = jnp.sum(sum_acc[...], axis=1, keepdims=True)   # (Cp, 1)
        psq_ref[0] = jnp.sum(sq_acc[...], axis=1, keepdims=True)


def _norm_kernel(x_ref, scale_ref, bias_ref, o_ref):
    """y = x * scale + bias on one (nb, Cp, T) tile (affine already folded)."""
    x = x_ref[...].astype(jnp.float32)
    o_ref[...] = (x * scale_ref[...] + bias_ref[...]).astype(o_ref.dtype)


# ----------------------------------------------------------------------------
# Tiling helpers
# ----------------------------------------------------------------------------
def _pick_tiles(n, cp, hwp, itemsize):
    """Choose (nb, hw_tile, needs_mask) under a ~2 MB per-step byte budget."""
    budget_lanes = max(
        _MIN_LANE_TILE,
        (_MAX_BLOCK_BYTES // (cp * itemsize)) // _MIN_LANE_TILE * _MIN_LANE_TILE)

    if hwp % _MIN_LANE_TILE == 0:
        # Largest multiple-of-128 divisor of hwp under the byte budget.
        max_lanes = min(hwp, budget_lanes)
        hw_tile = _MIN_LANE_TILE
        for d in range(max_lanes, _MIN_LANE_TILE - 1, -_MIN_LANE_TILE):
            if hwp % d == 0:
                hw_tile = d
                break
        needs_mask = False
    elif cp * hwp * itemsize <= _FULL_ROW_CAP_BYTES:
        hw_tile = hwp              # full trailing dim: exempt from the 128 rule
        needs_mask = False
    else:
        hw_tile = budget_lanes     # 128-aligned tiles + in-kernel lane mask
        needs_mask = True

    # Grow the batch block to reach the byte budget (nb must divide n so the
    # sum in pass 1 never sees padded batch rows).
    nb = 1
    for d in range(n, 0, -1):
        if n % d == 0 and d * cp * hw_tile * itemsize <= _MAX_BLOCK_BYTES:
            nb = d
            break
    return nb, hw_tile, needs_mask


# ----------------------------------------------------------------------------
# Wrappers
# ----------------------------------------------------------------------------
def _batch_norm_small(x3, gamma_f, beta_f, inv_count, out_dtype):
    """Single fused kernel (1R + 1W) for activations that fit in VMEM."""
    n, c, hw = x3.shape
    gamma3 = gamma_f.reshape(1, c, 1)
    beta3 = beta_f.reshape(1, c, 1)
    return pl.pallas_call(
        functools.partial(_fused_small_kernel, inv_count=inv_count),
        out_shape=jax.ShapeDtypeStruct((n, c, hw), out_dtype),
        grid=(1,),
        in_specs=[
            pl.BlockSpec((n, c, hw), lambda i: (0, 0, 0)),
            pl.BlockSpec((1, c, 1), lambda i: (0, 0, 0)),
            pl.BlockSpec((1, c, 1), lambda i: (0, 0, 0)),
        ],
        out_specs=pl.BlockSpec((n, c, hw), lambda i: (0, 0, 0)),
        compiler_params=pltpu.CompilerParams(
            dimension_semantics=("arbitrary",),
            vmem_limit_bytes=_VMEM_LIMIT),
    )(x3, gamma3, beta3)


def batch_norm_2d(x_nchw, gamma, beta, *, force_tiled=False):
    """BatchNorm2d forward, training-mode (biased) batch statistics.

    x_nchw: (N, C, H, W)   gamma, beta: (C,)
    returns (N, C, H, W) in x_nchw's dtype.
    """
    n, c, h, w = x_nchw.shape
    hw = h * w
    out_dtype = x_nchw.dtype
    itemsize = jnp.dtype(out_dtype).itemsize
    inv_count = 1.0 / float(n * hw)

    gamma_f = gamma.astype(jnp.float32).reshape(c)
    beta_f = beta.astype(jnp.float32).reshape(c)

    x3 = x_nchw.reshape(n, c, hw)               # free reshape, no transpose

    # ---- Fast path: whole activation fits comfortably in VMEM (1R + 1W). ----
    # Threshold sized for the smallest VMEM (v7x, 64 MiB), so it is
    # generation-safe; bigger-VMEM chips simply fall to the tiled path sooner.
    if not force_tiled and n * c * hw * 4 <= _FAST_PATH_F32_BYTES:
        y3 = _batch_norm_small(x3, gamma_f, beta_f, inv_count, out_dtype)
        return y3.reshape(n, c, h, w)

    # ---- Tiled path ----------------------------------------------------------
    # Free (row-major) reshape packing small C onto sublanes:
    #   (N, C, HW) -> (N, C*G, HW/G)
    sublanes = max(8, 32 // itemsize)           # 8 for f32, 16 for bf16
    g = 1
    if c < sublanes:
        for cand in range(max(1, sublanes // c), 0, -1):
            if hw % cand == 0:
                g = cand
                break
    cp, hwp = c * g, hw // g
    x3p = x3.reshape(n, cp, hwp)

    nb, hw_tile, needs_mask = _pick_tiles(n, cp, hwp, itemsize)
    num_i = n // nb
    num_k = pl.cdiv(hwp, hw_tile)
    total_steps = num_i * num_k
    num_splits = 2 if total_steps >= 2 else 1   # split pass-1 reduction over TCs
    steps_half = pl.cdiv(total_steps, num_splits)

    # ---- Pass 1: per-core partial sums / sums-of-squares ---------------------
    def x_stats_index(p, s):
        flat = jnp.minimum(p * steps_half + s, total_steps - 1)
        return (flat // num_k, 0, flat % num_k)

    psum, psq = pl.pallas_call(
        functools.partial(_stats_kernel, total_steps=total_steps,
                          num_k=num_k, hwp=hwp, needs_mask=needs_mask),
        out_shape=(jax.ShapeDtypeStruct((num_splits, cp, 1), jnp.float32),
                   jax.ShapeDtypeStruct((num_splits, cp, 1), jnp.float32)),
        grid=(num_splits, steps_half),
        in_specs=[pl.BlockSpec((nb, cp, hw_tile), x_stats_index)],
        out_specs=(pl.BlockSpec((1, cp, 1), lambda p, s: (p, 0, 0)),
                   pl.BlockSpec((1, cp, 1), lambda p, s: (p, 0, 0))),
        scratch_shapes=[pltpu.VMEM((cp, hw_tile), jnp.float32),
                        pltpu.VMEM((cp, hw_tile), jnp.float32)],
        compiler_params=pltpu.CompilerParams(
            dimension_semantics=("parallel", "arbitrary"),
            vmem_limit_bytes=_VMEM_LIMIT),
    )(x3p)

    # ---- Tiny finalize (C-sized) in plain XLA: fold affine into scale/bias ---
    sum_c = jnp.sum(psum.reshape(num_splits, c, g), axis=(0, 2))     # (C,)
    sq_c = jnp.sum(psq.reshape(num_splits, c, g), axis=(0, 2))
    mean = sum_c * inv_count
    var = jnp.maximum(sq_c * inv_count - mean * mean, 0.0)
    scale_c = gamma_f * lax.rsqrt(var + EPS)
    bias_c = beta_f - mean * scale_c
    scale_p = jnp.repeat(scale_c, g).reshape(cp, 1)                  # packed rows
    bias_p = jnp.repeat(bias_c, g).reshape(cp, 1)

    # ---- Pass 2: streaming normalize (both grid axes independent) ------------
    y3p = pl.pallas_call(
        _norm_kernel,
        out_shape=jax.ShapeDtypeStruct((n, cp, hwp), out_dtype),
        grid=(num_i, num_k),
        in_specs=[
            pl.BlockSpec((nb, cp, hw_tile), lambda i, k: (i, 0, k)),
            pl.BlockSpec((cp, 1), lambda i, k: (0, 0)),
            pl.BlockSpec((cp, 1), lambda i, k: (0, 0)),
        ],
        out_specs=pl.BlockSpec((nb, cp, hw_tile), lambda i, k: (i, 0, k)),
        compiler_params=pltpu.CompilerParams(
            dimension_semantics=("parallel", "parallel"),
            vmem_limit_bytes=_VMEM_LIMIT),
    )(x3p, scale_p, bias_p)

    return y3p.reshape(n, c, h, w)


def batch_norm_module_forward(inp, gamma, beta):
    """Reproduces BatchNorm.forward((x, m)) -> (bn(x), m)."""
    x, m = inp
    return batch_norm_2d(x, gamma, beta), m


# ----------------------------------------------------------------------------
# Smoke test
# ----------------------------------------------------------------------------
def _bn_reference(x, gamma, beta):
    c = x.shape[1]
    mean = jnp.mean(x, axis=(0, 2, 3), keepdims=True)
    var = jnp.mean((x - mean) ** 2, axis=(0, 2, 3), keepdims=True)
    return ((x - mean) / jnp.sqrt(var + EPS) * gamma.reshape(1, c, 1, 1)
            + beta.reshape(1, c, 1, 1))


if __name__ == "__main__":
    key = jax.random.PRNGKey(0)
    kx, km = jax.random.split(key)

    N, C, H, W = 2, 4, 16, 16
    x = jax.random.normal(kx, (N, C, H, W), dtype=jnp.float32) * 2.0 + 0.5
    m = (jax.random.uniform(km, (N, 1, H, W)) > 0.3).astype(jnp.float32)

    # Deterministic parameter init matching nn.BatchNorm2d.__init__:
    gamma = jnp.ones((C,), dtype=jnp.float32)   # weight
    beta = jnp.zeros((C,), dtype=jnp.float32)   # bias

    y_ref = _bn_reference(x, gamma, beta)

    # 1) Default dispatch -> fits-in-VMEM fused fast path.
    y, m_out = batch_norm_module_forward((x, m), gamma, beta)
    y = jax.block_until_ready(y)
    m_out = jax.block_until_ready(m_out)
    assert y.shape == x.shape and y.dtype == x.dtype
    assert jnp.allclose(y, y_ref, atol=1e-4, rtol=1e-4)
    assert jnp.array_equal(m_out, m)

    # 2) Same tiny input through the tiled two-pass path (channel packing,
    #    split-reduction pass 1, folded-affine pass 2).
    y_tiled = jax.block_until_ready(
        batch_norm_2d(x, gamma, beta, force_tiled=True))
    assert jnp.allclose(y_tiled, y_ref, atol=1e-4, rtol=1e-4)

    # 3) HW not a multiple of 128, small rows -> full-row tiled branch.
    x2 = jax.random.normal(jax.random.PRNGKey(1), (3, 4, 24, 40),
                           dtype=jnp.float32) - 1.5
    y2 = jax.block_until_ready(
        batch_norm_2d(x2, gamma, beta, force_tiled=True))
    assert jnp.allclose(y2, _bn_reference(x2, gamma, beta),
                        atol=1e-4, rtol=1e-4)

    # 4) HW not a multiple of 128, large rows -> masked 128-aligned tiles,
    #    multi-step split reduction (exercises the lane mask + clamped step).
    C3 = 16
    gamma3 = jnp.ones((C3,), dtype=jnp.float32)
    beta3 = jnp.zeros((C3,), dtype=jnp.float32)
    x3 = jax.random.normal(jax.random.PRNGKey(2), (1, C3, 257, 257),
                           dtype=jnp.float32) * 0.7 + 0.2
    y3 = jax.block_until_ready(batch_norm_2d(x3, gamma3, beta3))  # tiled by size
    assert jnp.allclose(y3, _bn_reference(x3, gamma3, beta3),
                        atol=1e-4, rtol=1e-4)

    print("KERNEL_OK")
</pallas_src>

<mosaic_0001>
module attributes {stable_mosaic.version = 11 : i64} {
  func.func @_fused_small_kernel(%arg0: i32, %arg1: memref<2x4x256xf32, #tpu.memory_space<vmem>>, %arg2: memref<1x4x1xf32, #tpu.memory_space<vmem>>, %arg3: memref<1x4x1xf32, #tpu.memory_space<vmem>>, %arg4: memref<2x4x256xf32, #tpu.memory_space<vmem>>) attributes {dimension_semantics = [#tpu.dimension_semantics<arbitrary>], iteration_bounds = array<i64: 1>, scalar_prefetch = 0 : i64, scratch_operands = 0 : i64, tpu.core_type = #tpu.core_type<tc>, window_params = [{pipeline_mode = #tpu.pipeline_mode<synchronous>, transform_indices = @transform_0, window_bounds = array<i64: 2, 4, 256>}, {pipeline_mode = #tpu.pipeline_mode<synchronous>, transform_indices = @transform_1, window_bounds = array<i64: 1, 4, 1>}, {pipeline_mode = #tpu.pipeline_mode<synchronous>, transform_indices = @transform_2, window_bounds = array<i64: 1, 4, 1>}, {pipeline_mode = #tpu.pipeline_mode<synchronous>, transform_indices = @transform_3, window_bounds = array<i64: 2, 4, 256>}]} {
    %c0 = arith.constant 0 : index
    %c0_0 = arith.constant 0 : index
    %c0_1 = arith.constant 0 : index
    %0 = vector.load %arg1[%c0, %c0_0, %c0_1] : memref<2x4x256xf32, #tpu.memory_space<vmem>>, vector<2x4x256xf32>
    %cst = arith.constant dense<0.000000e+00> : vector<2x4xf32>
    %1 = vector.multi_reduction <add>, %0, %cst [2] : vector<2x4x256xf32> to vector<2x4xf32>
    %2 = vector.shape_cast %1 : vector<2x4xf32> to vector<2x4x1xf32>
    %3 = arith.mulf %0, %0 : vector<2x4x256xf32>
    %cst_2 = arith.constant dense<0.000000e+00> : vector<2x4xf32>
    %4 = vector.multi_reduction <add>, %3, %cst_2 [2] : vector<2x4x256xf32> to vector<2x4xf32>
    %5 = vector.shape_cast %4 : vector<2x4xf32> to vector<2x4x1xf32>
    %cst_3 = arith.constant dense<0.000000e+00> : vector<4x1xf32>
    %6 = vector.multi_reduction <add>, %2, %cst_3 [0] : vector<2x4x1xf32> to vector<4x1xf32>
    %7 = vector.shape_cast %6 : vector<4x1xf32> to vector<1x4x1xf32>
    %cst_4 = arith.constant 0.001953125 : f32
    %8 = vector.broadcast %cst_4 : f32 to vector<1x4x1xf32>
    %9 = arith.mulf %7, %8 : vector<1x4x1xf32>
    %cst_5 = arith.constant dense<0.000000e+00> : vector<4x1xf32>
    %10 = vector.multi_reduction <add>, %5, %cst_5 [0] : vector<2x4x1xf32> to vector<4x1xf32>
    %11 = vector.shape_cast %10 : vector<4x1xf32> to vector<1x4x1xf32>
    %cst_6 = arith.constant 0.001953125 : f32
    %12 = vector.broadcast %cst_6 : f32 to vector<1x4x1xf32>
    %13 = arith.mulf %11, %12 : vector<1x4x1xf32>
    %14 = arith.mulf %9, %9 : vector<1x4x1xf32>
    %15 = arith.subf %13, %14 : vector<1x4x1xf32>
    %cst_7 = arith.constant 0.000000e+00 : f32
    %16 = vector.broadcast %cst_7 : f32 to vector<1x4x1xf32>
    %17 = arith.maximumf %15, %16 : vector<1x4x1xf32>
    %c0_8 = arith.constant 0 : index
    %c0_9 = arith.constant 0 : index
    %c0_10 = arith.constant 0 : index
    %18 = vector.load %arg2[%c0_8, %c0_9, %c0_10] : memref<1x4x1xf32, #tpu.memory_space<vmem>>, vector<1x4x1xf32>
    %cst_11 = arith.constant 9.99999974E-6 : f32
    %19 = vector.broadcast %cst_11 : f32 to vector<1x4x1xf32>
    %20 = arith.addf %17, %19 : vector<1x4x1xf32>
    %21 = math.rsqrt %20 : vector<1x4x1xf32>
    %22 = arith.mulf %18, %21 : vector<1x4x1xf32>
    %c0_12 = arith.constant 0 : index
    %c0_13 = arith.constant 0 : index
    %c0_14 = arith.constant 0 : index
    %23 = vector.load %arg3[%c0_12, %c0_13, %c0_14] : memref<1x4x1xf32, #tpu.memory_space<vmem>>, vector<1x4x1xf32>
    %24 = arith.mulf %9, %22 : vector<1x4x1xf32>
    %25 = arith.subf %23, %24 : vector<1x4x1xf32>
    %26 = vector.broadcast %22 : vector<1x4x1xf32> to vector<2x4x256xf32>
    %27 = arith.mulf %0, %26 : vector<2x4x256xf32>
    %28 = vector.broadcast %25 : vector<1x4x1xf32> to vector<2x4x256xf32>
    %29 = arith.addf %27, %28 : vector<2x4x256xf32>
    %c0_15 = arith.constant 0 : index
    %c0_16 = arith.constant 0 : index
    %c0_17 = arith.constant 0 : index
    %30 = vector.load %arg4[%c0_15, %c0_16, %c0_17] : memref<2x4x256xf32, #tpu.memory_space<vmem>>, vector<2x4x256xf32>
    tpu.vector_store %arg4[%c0_15, %c0_16, %c0_17], %29 {strides = array<i32>} : memref<2x4x256xf32, #tpu.memory_space<vmem>>, vector<2x4x256xf32>,
    return
  }
  func.func @transform_0(%arg0: i32) -> (i32, i32, i32) {
    %c0_i32 = arith.constant 0 : i32
    %c0_i32_0 = arith.constant 0 : i32
    %c0_i32_1 = arith.constant 0 : i32
    %c0_i32_2 = arith.constant 0 : i32
    return %c0_i32, %c0_i32_0, %c0_i32_1 : i32, i32, i32
  }
  func.func @transform_1(%arg0: i32) -> (i32, i32, i32) {
    %c0_i32 = arith.constant 0 : i32
    %c0_i32_0 = arith.constant 0 : i32
    %c0_i32_1 = arith.constant 0 : i32
    %c0_i32_2 = arith.constant 0 : i32
    return %c0_i32, %c0_i32_0, %c0_i32_1 : i32, i32, i32
  }
  func.func @transform_2(%arg0: i32) -> (i32, i32, i32) {
    %c0_i32 = arith.constant 0 : i32
    %c0_i32_0 = arith.constant 0 : i32
    %c0_i32_1 = arith.constant 0 : i32
    %c0_i32_2 = arith.constant 0 : i32
    return %c0_i32, %c0_i32_0, %c0_i32_1 : i32, i32, i32
  }
  func.func @transform_3(%arg0: i32) -> (i32, i32, i32) {
    %c0_i32 = arith.constant 0 : i32
    %c0_i32_0 = arith.constant 0 : i32
    %c0_i32_1 = arith.constant 0 : i32
    %c0_i32_2 = arith.constant 0 : i32
    return %c0_i32, %c0_i32_0, %c0_i32_1 : i32, i32, i32
  }
}

</mosaic_0001>

<llo_original>
// kernel: tpu_custom_call.1
$region0: #{tpu_custom_call.1}
  #allocation0 [shape = 'u32[]', space=smem, size = 0x4, offset = 0x4, fixed_abs, tag = 'smem constant byte address 0x4 - core index']
  #allocation1 [shape = 'u32[144,128]{1,0:T(1,128)}', space=vmem, size = 0x12000, scoped, tag = 'internal scratch']
  %s0 = inlined_call_operand.hbm [shape: f32[2,4,256], index: 0, kind: input, shape index: {}]
  %s1 = inlined_call_operand.vmem [shape: f32[1,4,1], index: 1, kind: input, shape index: {}]
  %s2 = inlined_call_operand.vmem [shape: f32[1,4,1], index: 2, kind: input, shape index: {}]
  %s3 = inlined_call_operand.hbm [shape: f32[2,4,256], index: 3, kind: output, shape index: {}]
  %s4 = sld [smem:[#allocation0]]
  $region26: #{tpu_custom_call.1} parent=0
    _
  %s6 = ssub.s32 1, %s4
  %s7 = scalar_select 0, %s6, %s4
  $region1: #{tpu_custom_call.1} parent=0
    #allocation2 [shape = 'u8[8192]{0}', space=vmem, size = 0x2000, scoped, tag = 'input window, operand 0, single buffered']
    #allocation3 [shape = 's32[1]{0}', space=sflag, size = 0x4, scoped, tag = 'scoped memory for tpu_custom_call.1']
    #allocation4 [shape = 's32[1]{0}', space=sflag, size = 0x4, scoped, tag = 'scoped memory for tpu_custom_call.1']
    #allocation5 [shape = 'u8[8192]{0}', space=vmem, size = 0x2000, scoped, tag = 'output window, operand 0, single buffered']
    %8 = vsyncpa [#allocation3], 0
    %9 = vsyncpa [#allocation4], 0
    // Predicated region
    $region2: #{tpu_custom_call.1} parent=1 // pred_check
      _
    $region3: #{tpu_custom_call.1} parent=1 // pred_check_branch
      %11 = sbr.rel (0) target = $region5
    $region4: #{tpu_custom_call.1} parent=1 // pred_region
      %s13 = ssub.s32 256, 256
      %14 = vsyncadd [#allocation3], %s13
      %s15 = sshll.u32 [#allocation2], 4
      %s16 = int_to_ptr.vmem [resolvable:$true] %s15
      %21 = dma.hbm_to_vmem [thread:$0]  %s0, 256, %s16, [#allocation3], 128, 128, 8
    $region5: #{tpu_custom_call.1} parent=1 // pred_fallthru
      _
    // Predicated region
    $region6: #{tpu_custom_call.1} parent=1 // pred_check
      _
    $region7: #{tpu_custom_call.1} parent=1 // pred_check_branch
      %23 = sbr.rel (0) target = $region9
    $region8: #{tpu_custom_call.1} parent=1 // pred_region
      _
    $region9: #{tpu_custom_call.1} parent=1 // pred_fallthru
      _
    // Predicated region
    $region10: #{tpu_custom_call.1} parent=1 // pred_check
      _
    $region11: #{tpu_custom_call.1} parent=1 // pred_check_branch
      %25 = sbr.rel (0) target = $region13
    $region12: #{tpu_custom_call.1} parent=1 // pred_region
      _
    $region13: #{tpu_custom_call.1} parent=1 // pred_fallthru
      _
    // Predicated region
    $region14: #{tpu_custom_call.1} parent=1 // pred_check
      _
    $region15: #{tpu_custom_call.1} parent=1 // pred_check_branch
      %27 = sbr.rel (0) target = $region17
    $region16: #{tpu_custom_call.1} parent=1 // pred_region
      %28 = dma.done [#allocation3], 256
    $region17: #{tpu_custom_call.1} parent=1 // pred_fallthru
      _
    %v29 = vld [vmem:[#allocation2] sm:$0xff]
    %v30 = vld [vmem:[#allocation2 + $0x8] sm:$0xff]
    %v33 = vcombine.high %v29, %v29
    %v34 = vcombine.high %v30, %v30
    %vm37 = vcmask 1043456
    %v38 = vsel %vm37, %v29, 0.0
    %v39 = vsel %vm37, %v33, 0.0
    %v40 = vadd.f32 %v38, %v39
    %41 = vadd.xlane.f32.xlu0 %v40
    %v42 = vpop.xlane.xlu0 %41
    %v43 = vsel %vm37, %v30, 0.0
    %v44 = vsel %vm37, %v34, 0.0
    %v45 = vadd.f32 %v43, %v44
    %46 = vadd.xlane.f32.xlu0 %v45
    %v47 = vpop.xlane.xlu0 %46
    %v48 = vmul.f32 %v29, %v29
    %v49 = vmul.f32 %v30, %v30
    %v52 = vcombine.high %v48, %v48
    %v53 = vcombine.high %v49, %v49
    %v56 = vsel %vm37, %v48, 0.0
    %v57 = vsel %vm37, %v52, 0.0
    %v58 = vadd.f32 %v56, %v57
    %59 = vadd.xlane.f32.xlu0 %v58
    %v60 = vpop.xlane.xlu0 %59
    %v61 = vsel %vm37, %v49, 0.0
    %v62 = vsel %vm37, %v53, 0.0
    %v63 = vadd.f32 %v61, %v62
    %64 = vadd.xlane.f32.xlu0 %v63
    %v65 = vpop.xlane.xlu0 %64
    %v66 = vsel %vm37, %v42, 0.0
    %v67 = vsel %vm37, %v47, 0.0
    %v68 = vadd.f32 %v66, %v67
    %v69 = vmul.f32 %v68, 0.001953125
    %v70 = vsel %vm37, %v60, 0.0
    %v71 = vsel %vm37, %v65, 0.0
    %v72 = vadd.f32 %v70, %v71
    %v73 = vmul.f32 %v72, 0.001953125
    %v74 = vmul.f32 %v69, %v69
    %v75 = vsub.f32 %v73, %v74
    %v76 = vmax.f32 %v75, 0.0
    %v77 = vld [vmem:[%s1] sm:$0xf]
    %v78 = vadd.f32 %v76, 1e-05
    %v79 = vrsqrt.pop %v78
    %v80 = vmul.f32 %v77, %v79
    %v81 = vld [vmem:[%s2] sm:$0xf]
    %v82 = vmul.f32 %v69, %v80
    %v83 = vsub.f32 %v81, %v82
    %85 = vset.pattern.permute.xlu0 0
    %86 = vperm.xlu0 %85, %v80
    %v87 = vpop.permute.xlu0 %86
    %v89 = vunpack.c.l.s4 839922192
    %v90 = vunpack.c.0.s8 %v89
    %v91 = vlaneseq
    %v92 = vshrl.u32 %v91, 7
    %v93 = vsub.s32 %v90, %v92
    %v94 = vrot.slane %v87, %v93
    %v96 = vmul.f32 %v29, %v94
    %v97 = vmul.f32 %v30, %v94
    %99 = vset.pattern.permute.xlu0 0
    %100 = vperm.xlu0 %99, %v83
    %v101 = vpop.permute.xlu0 %100
    %v103 = vunpack.c.l.s4 839922192
    %v104 = vunpack.c.0.s8 %v103
    %v105 = vlaneseq
    %v106 = vshrl.u32 %v105, 7
    %v107 = vsub.s32 %v104, %v106
    %v108 = vrot.slane %v101, %v107
    %v110 = vadd.f32 %v96, %v108
    %v111 = vadd.f32 %v97, %v108
    %112 = vst [vmem:[#allocation5] sm:$0xff] %v110
    %113 = vst [vmem:[#allocation5 + $0x8] sm:$0xff] %v111
    // Predicated region
    $region18: #{tpu_custom_call.1} parent=1 // pred_check
      _
    $region19: #{tpu_custom_call.1} parent=1 // pred_check_branch
      %115 = sbr.rel (0) target = $region21
    $region20: #{tpu_custom_call.1} parent=1 // pred_region
      %s117 = ssub.s32 256, 256
      %118 = vsyncadd [#allocation4], %s117
      %s119 = sshll.u32 [#allocation5], 4
      %s120 = int_to_ptr.vmem [resolvable:$true] %s119
      %125 = dma.vmem_to_hbm [thread:$0]  %s120, 256, %s3, [#allocation4], 128, 128, 8
    $region21: #{tpu_custom_call.1} parent=1 // pred_fallthru
      _
    // Predicated region
    $region22: #{tpu_custom_call.1} parent=1 // pred_check
      _
    $region23: #{tpu_custom_call.1} parent=1 // pred_check_branch
      %127 = sbr.rel (0) target = $region25
    $region24: #{tpu_custom_call.1} parent=1 // pred_region
      %128 = dma.done [#allocation4], 256
    $region25: #{tpu_custom_call.1} parent=1 // pred_fallthru
      _
    %129 = vsyncpa [#allocation3], 1
    %130 = vsyncpa [#allocation4], 1

</llo_original>
